<compile_context>
chip_gen: v7x
topology: tpu7x:2x2x1
jax: 0.10.0
libtpu: 0.0.40
codegen_flags: <defaults>
</compile_context>

<pallas_src>
import functools

import jax
import jax.numpy as jnp
from jax.experimental import pallas as pl
from jax.experimental.pallas import tpu as pltpu


def _round_up(x, m):
    return (x + m - 1) // m * m


def _gauss_pe_kernel(xt_ref, freq_ref, out_ref, *, num_freqs, d_input):
    # xt_ref:   (D, BN)         transposed block of input rows (lane-dense on N)
    # freq_ref: (F*D, 1)        flattened frequencies, broadcast over lanes
    # out_ref:  (D*(2F+1), BN)  [x ; sin(enc) ; cos(enc)] stacked on sublanes
    xt = xt_ref[...]                               # (D, BN)
    freq = freq_ref[...]                           # (F*D, 1)
    fd = num_freqs * d_input

    # Replicate the D rows F times along sublanes so row f*D+d carries x[:, d],
    # matching torch's row-major reshape(N, F*D) flattening order.
    x_rep = jnp.tile(xt, (num_freqs, 1))           # (F*D, BN), sublane replication
    enc = freq * x_rep                             # (F*D, BN), dense VPU multiply

    # Direct slice stores — no in-kernel concatenate.
    out_ref[0:d_input, :] = xt
    out_ref[d_input:d_input + fd, :] = jnp.sin(enc)
    out_ref[d_input + fd:, :] = jnp.cos(enc)


@functools.partial(jax.jit, static_argnames=("block_n",))
def gaussian_positional_encoding(x, frequencies, *, block_n=16384):
    """x: (N, d_input) f32, frequencies: (num_freqs, d_input) f32.

    Returns (N, d_input*(2*num_freqs+1)), matching the PyTorch module.
    """
    n, d = x.shape
    f, d2 = frequencies.shape
    assert d == d2
    fd = f * d
    d_out = d * (2 * f + 1)

    # Lane tile: multiple of 128, capped by a VMEM budget for the double-buffered
    # input/output blocks plus the (F*D, BN) in-kernel temporaries.
    bytes_per_lane = 4 * (2 * d + 2 * d_out + 4 * fd)
    bn_cap = max(128, (12 * 1024 * 1024 // bytes_per_lane) // 128 * 128)
    bn = min(_round_up(block_n, 128), bn_cap, _round_up(n, 128))
    n_pad = _round_up(n, bn)

    # Wrapper-side layout plumbing (outside the kernel): transpose so N lands on
    # lanes; pad N only when it is ragged w.r.t. the tile.
    xt = x.T                                                    # (D, N)
    if n_pad != n:
        xt = jnp.pad(xt, ((0, 0), (0, n_pad - n)))              # (D, N_pad)
    freq_flat = frequencies.reshape(fd, 1)                      # (F*D, 1)

    kernel = functools.partial(_gauss_pe_kernel, num_freqs=f, d_input=d)

    out_t = pl.pallas_call(
        kernel,
        out_shape=jax.ShapeDtypeStruct((d_out, n_pad), x.dtype),
        grid=(n_pad // bn,),
        in_specs=[
            pl.BlockSpec((d, bn), lambda i: (0, i)),        # lane tile of x^T
            pl.BlockSpec((fd, 1), lambda i: (0, 0)),        # resident frequencies
        ],
        out_specs=pl.BlockSpec((d_out, bn), lambda i: (0, i)),
        compiler_params=pltpu.CompilerParams(
            dimension_semantics=("parallel",),
            vmem_limit_bytes=32 * 1024 * 1024,
        ),
        cost_estimate=pl.CostEstimate(
            flops=n_pad * fd,
            transcendentals=2 * n_pad * fd,
            bytes_accessed=4 * (n_pad * d + fd + n_pad * d_out),
        ),
    )(xt, freq_flat)

    # Back to the PyTorch contract: (N, d_out), dropping any padded columns.
    return out_t[:, :n].T


def _reference(x, frequencies):
    enc = (x[:, None, :] * frequencies[None, :, :]).reshape(x.shape[0], -1)
    return jnp.concatenate([x, jnp.sin(enc), jnp.cos(enc)], axis=-1)


if __name__ == "__main__":
    # Module config (matches __init__ shapes): num_freqs=8, d_input=3, scale=1.0
    num_freqs = 8
    d_input = 3
    scale = 1.0
    n_rows = 16  # batch of coordinate points (ragged vs. the 128-lane tile)

    key = jax.random.PRNGKey(0)
    k_freq, k_x = jax.random.split(key)

    # Deterministic parameter init (torch.randn(num_freqs, d_input) * scale analog).
    frequencies = jax.random.normal(k_freq, (num_freqs, d_input),
                                    dtype=jnp.float32) * scale
    x = jax.random.normal(k_x, (n_rows, d_input), dtype=jnp.float32)

    out = gaussian_positional_encoding(x, frequencies)
    out = jax.block_until_ready(out)

    expected = _reference(x, frequencies)
    assert out.shape == (n_rows, d_input * (num_freqs * 2 + 1)), out.shape
    assert jnp.allclose(out, expected, atol=1e-5, rtol=1e-5), (
        float(jnp.max(jnp.abs(out - expected))))

    print("KERNEL_OK")
</pallas_src>

<mosaic_0001>
module attributes {stable_mosaic.version = 11 : i64} {
  func.func @_gauss_pe_kernel(%arg0: i32, %arg1: memref<3x128xf32, #tpu.memory_space<vmem>>, %arg2: memref<24x1xf32, #tpu.memory_space<vmem>>, %arg3: memref<51x128xf32, #tpu.memory_space<vmem>>) attributes {dimension_semantics = [#tpu.dimension_semantics<parallel>], iteration_bounds = array<i64: 1>, scalar_prefetch = 0 : i64, scratch_operands = 0 : i64, tpu.core_type = #tpu.core_type<tc>, window_params = [{transform_indices = @transform_0, window_bounds = array<i64: 3, 128>}, {pipeline_mode = #tpu.pipeline_mode<synchronous>, transform_indices = @transform_1, window_bounds = array<i64: 24, 1>}, {transform_indices = @transform_2, window_bounds = array<i64: 51, 128>}]} {
    %c0 = arith.constant 0 : index
    %c0_0 = arith.constant 0 : index
    %0 = vector.load %arg1[%c0, %c0_0] : memref<3x128xf32, #tpu.memory_space<vmem>>, vector<3x128xf32>
    %c0_1 = arith.constant 0 : index
    %c0_2 = arith.constant 0 : index
    %1 = vector.load %arg2[%c0_1, %c0_2] : memref<24x1xf32, #tpu.memory_space<vmem>>, vector<24x1xf32>
    %2 = tpu.concatenate %0, %0, %0, %0, %0, %0, %0, %0 in 0 : vector<3x128xf32>, vector<3x128xf32>, vector<3x128xf32>, vector<3x128xf32>, vector<3x128xf32>, vector<3x128xf32>, vector<3x128xf32>, vector<3x128xf32> -> vector<24x128xf32>
    %3 = vector.broadcast %1 : vector<24x1xf32> to vector<24x128xf32>
    %4 = arith.mulf %3, %2 : vector<24x128xf32>
    %c0_3 = arith.constant 0 : index
    %c0_4 = arith.constant 0 : index
    %5 = vector.load %arg3[%c0_3, %c0_4] : memref<51x128xf32, #tpu.memory_space<vmem>>, vector<3x128xf32>
    tpu.vector_store %arg3[%c0_3, %c0_4], %0 {strides = array<i32>} : memref<51x128xf32, #tpu.memory_space<vmem>>, vector<3x128xf32>,
    %6 = math.sin %4 : vector<24x128xf32>
    %c3 = arith.constant 3 : index
    %c0_5 = arith.constant 0 : index
    %7 = vector.load %arg3[%c3, %c0_5] : memref<51x128xf32, #tpu.memory_space<vmem>>, vector<24x128xf32>
    tpu.vector_store %arg3[%c3, %c0_5], %6 {strides = array<i32>} : memref<51x128xf32, #tpu.memory_space<vmem>>, vector<24x128xf32>,
    %8 = math.cos %4 : vector<24x128xf32>
    %c27 = arith.constant 27 : index
    %c0_6 = arith.constant 0 : index
    %9 = vector.load %arg3[%c27, %c0_6] : memref<51x128xf32, #tpu.memory_space<vmem>>, vector<24x128xf32>
    tpu.vector_store %arg3[%c27, %c0_6], %8 {strides = array<i32>} : memref<51x128xf32, #tpu.memory_space<vmem>>, vector<24x128xf32>,
    return
  }
  func.func @transform_0(%arg0: i32) -> (i32, i32) {
    %c0_i32 = arith.constant 0 : i32
    %c0_i32_0 = arith.constant 0 : i32
    return %c0_i32, %arg0 : i32, i32
  }
  func.func @transform_1(%arg0: i32) -> (i32, i32) {
    %c0_i32 = arith.constant 0 : i32
    %c0_i32_0 = arith.constant 0 : i32
    %c0_i32_1 = arith.constant 0 : i32
    return %c0_i32, %c0_i32_0 : i32, i32
  }
  func.func @transform_2(%arg0: i32) -> (i32, i32) {
    %c0_i32 = arith.constant 0 : i32
    %c0_i32_0 = arith.constant 0 : i32
    return %c0_i32, %arg0 : i32, i32
  }
}

</mosaic_0001>

<llo_original>
// kernel: gaussian_positional_encoding.1
$region0: #{gaussian_positional_encoding.1}
  #allocation0 [shape = 'u32[]', space=smem, size = 0x4, offset = 0x4, fixed_abs, tag = 'smem constant byte address 0x4 - core index']
  #allocation1 [shape = 'u32[144,128]{1,0:T(1,128)}', space=vmem, size = 0x12000, scoped, tag = 'internal scratch']
  %s0 = inlined_call_operand.vmem [shape: f32[3,128], index: 0, kind: input, shape index: {}]
  %s1 = inlined_call_operand.vmem [shape: f32[24,1], index: 1, kind: input, shape index: {}]
  %s2 = inlined_call_operand.vmem [shape: f32[51,128], index: 2, kind: output, shape index: {}]
  %s3 = sld [smem:[#allocation0]]
  $region18: #{gaussian_positional_encoding.1} parent=0
    _
  %s5 = ssub.s32 1, %s3
  %s6 = scalar_select 0, %s5, %s3
  // Predicated region
  $region2: #{gaussian_positional_encoding.1} parent=0 // pred_check
    _
  $region3: #{gaussian_positional_encoding.1} parent=0 // pred_check_branch
    %8 = sbr.rel (0) target = $region5
  $region4: #{gaussian_positional_encoding.1} parent=0 // pred_region
    _
  $region5: #{gaussian_positional_encoding.1} parent=0 // pred_fallthru
    _
  // Predicated region
  $region6: #{gaussian_positional_encoding.1} parent=0 // pred_check
    _
  $region7: #{gaussian_positional_encoding.1} parent=0 // pred_check_branch
    %10 = sbr.rel (0) target = $region9
  $region8: #{gaussian_positional_encoding.1} parent=0 // pred_region
    _
  $region9: #{gaussian_positional_encoding.1} parent=0 // pred_fallthru
    _
  %v11 = vld [vmem:[%s0] sm:$0x7]
  %v12 = vld [vmem:[%s1] sm:$0xff]
  %v13 = vld [vmem:[%s1 + $0x8] sm:$0xff]
  %v14 = vld [vmem:[%s1 + $0x10] sm:$0xff]
  %v16 = vrot.slane %v11, 5
  %v18 = vrot.slane %v11, 2
  %v20 = vrot.slane %v11, 7
  %v22 = vrot.slane %v11, 4
  %v24 = vrot.slane %v11, 1
  %v26 = vrot.slane %v11, 6
  %v28 = vrot.slane %v11, 3
  %vm30 = vcmask 1042432
  %v31 = vsel %vm30, %v11, %v16
  %vm32 = vcmask 1045504
  %v33 = vsel %vm32, %v31, %v18
  %vm34 = vcmask 1040384
  %v35 = vsel %vm34, %v18, %v20
  %vm36 = vcmask 1043456
  %v37 = vsel %vm36, %v35, %v22
  %vm38 = vcmask 1046528
  %v39 = vsel %vm38, %v37, %v24
  %vm40 = vcmask 1041408
  %v41 = vsel %vm40, %v24, %v26
  %vm42 = vcmask 1044480
  %v43 = vsel %vm42, %v41, %v28
  %45 = vset.pattern.permute.xlu0 0
  %46 = vperm.xlu0 %45, %v12
  %v47 = vpop.permute.xlu0 %46
  %50 = vset.pattern.permute.xlu0 0
  %51 = vperm.xlu0 %50, %v13
  %v52 = vpop.permute.xlu0 %51
  %55 = vset.pattern.permute.xlu0 0
  %56 = vperm.xlu0 %55, %v14
  %v57 = vpop.permute.xlu0 %56
  %v59 = vmul.f32 %v47, %v33
  %v60 = vmul.f32 %v52, %v39
  %v61 = vmul.f32 %v57, %v43
  %62 = vst [vmem:[%s2] sm:$0x7] %v11
  %v63 = vand.u32 2147483647, %v59
  %vm64 = vcmp.le.f32.partialorder %v63, 0.7853982
  %vm65 = vcmp.lt.s32.totalorder %v59, 0
  %v66 = vand.u32 %v59, 2139095040
  %v67 = vshrl.u32 %v66, 23
  %v68 = vsub.s32 %v67, 127
  %v69 = vand.u32 2147483647, %v59
  %v70 = vand.u32 %v69, 8388607
  %v71 = vor.u32 %v70, 8388608
  %v72 = vsub.s32 0, %v71
  %v73 = vadd.s32 %v68, 1
  %vm74 = vcmp.gt.s32.totalorder %v73, 0
  %v75 = vsel %vm74, %v73, 0
  %v76 = vshrl.u32 %v75, 5
  %v77 = vand.u32 %v75, 31
  %v78 = vsub.s32 32, %v77
  %v79 = vshrl.u32 683565275, %v78
  %v80 = vshll.u32 683565275, %v77
  %v81 = vshrl.u32 2475754826, %v78
  %v82 = vor.u32 %v80, %v81
  %v83 = vshll.u32 2475754826, %v77
  %v84 = vshrl.u32 2131351028, %v78
  %v85 = vor.u32 %v83, %v84
  %v86 = vshll.u32 2131351028, %v77
  %v87 = vshrl.u32 2102212464, %v78
  %v88 = vor.u32 %v86, %v87
  %v89 = vshll.u32 2102212464, %v77
  %v90 = vshrl.u32 920167782, %v78
  %v91 = vor.u32 %v89, %v90
  %v92 = vshll.u32 920167782, %v77
  %v93 = vshrl.u32 1326507024, %v78
  %v94 = vor.u32 %v92, %v93
  %vm95 = vcmp.lt.s32.totalorder %v76, 1
  %vm96 = vcmp.lt.s32.totalorder %v76, 2
  %vm97 = vcmp.lt.s32.totalorder %v76, 3
  %vm98 = vcmp.lt.s32.totalorder %v76, 4
  %v99 = vsel %vm95, %v79, %v82
  %v100 = vsel %vm98, %v88, 2102212464
  %v101 = vsel %vm97, %v85, %v100
  %v102 = vsel %vm96, %v99, %v101
  %v103 = vsel %vm95, %v82, %v85
  %v104 = vsel %vm98, %v91, 920167782
  %v105 = vsel %vm97, %v88, %v104
  %v106 = vsel %vm96, %v103, %v105
  %v107 = vsel %vm95, %v85, %v88
  %v108 = vsel %vm98, %v94, 1326507024
  %v109 = vsel %vm97, %v91, %v108
  %v110 = vsel %vm96, %v107, %v109
  %v111 = vshll.u32 %v71, 8
  %v112 = vmul.u32.u64.compose %v111, %v110
  %v113 = vextract.low.u32 %v112
  %v114 = vextract.high.u32 %v112
  %v115 = vmul.u32.u64.compose %v111, %v106
  %v116 = vextract.low.u32 %v115
  %v117 = vextract.high.u32 %v115
  %v118 = vmul.u32 %v111, %v102
  %v119 = vadd.s32 %v114, %v116
  %vm120 = vc.u32 %v114, %v116
  %v121 = vadd.s32 %v117, 1
  %v122 = vsel %vm120, %v121, %v117
  %v123 = vadd.s32 %v118, %v122
  %v124 = vadd.s32 %v123, 536870912
  %v125 = vshrl.u32 %v124, 30
  %v126 = vshll.u32 %v125, 30
  %v127 = vsub.s32 %v123, %v126
  %vm128 = vcmp.lt.s32.totalorder %v127, 0
  %v129 = vsub.s32 0, %v127
  %v130 = vsel %vm128, %v129, %v127
  %v131 = vclz %v130
  %v132 = vsub.s32 %v131, 2
  %vm133 = vcmp.gt.s32.totalorder 0, %v132
  %v134 = vsel %vm133, 0, %v132
  %v135 = vsub.s32 32, %v134
  %v136 = vshll.u32 %v127, %v134
  %v137 = vshrl.u32 %v119, %v135
  %v138 = vor.u32 %v136, %v137
  %v139 = vsub.s32 4294967266, %v134
  %v140 = vadd.s32 %v139, 127
  %v141 = vshll.u32 %v140, 23
  %v142 = vor.u32 4788187, %v141
  %v143 = vand.u32 2147483647, %v142
  %v145 = vcvt.s32.f32 %v138
  %v146 = vmul.f32 %v145, %v143
  %v147 = vxor.u32 %v146, 2147483648
  %v148 = vsel %vm65, %v147, %v146
  %v149 = vsub.s32 4, %v125
  %v150 = vsel %vm65, %v149, %v125
  %v151 = vsel %vm64, %v59, %v148
  %v152 = vsel %vm64, 0, %v150
  %v153 = vcosq.f32.pop %v151
  %v154 = vsinq.f32.pop %v151
  %vm155 = vweird.f32 %v59
  %v156 = vadd.s32 %v152, 3
  %v157 = vand.u32 %v156, 3
  %vm158 = vcmp.lt.s32.totalorder %v157, 2
  %vm159 = vcmp.eq.s32.totalorder %v157, 0
  %v160 = vxor.u32 %v154, 2147483648
  %v161 = vsel %vm159, %v153, %v160
  %vm162 = vcmp.eq.s32.totalorder %v157, 2
  %v163 = vxor.u32 %v153, 2147483648
  %v164 = vsel %vm162, %v163, %v154
  %v165 = vsel %vm158, %v161, %v164
  %v166 = vsel %vm155, nan, %v165
  %v167 = vand.u32 2147483647, %v60
  %vm168 = vcmp.le.f32.partialorder %v167, 0.7853982
  %vm169 = vcmp.lt.s32.totalorder %v60, 0
  %v170 = vand.u32 %v60, 2139095040
  %v171 = vshrl.u32 %v170, 23
  %v172 = vsub.s32 %v171, 127
  %v173 = vand.u32 2147483647, %v60
  %v174 = vand.u32 %v173, 8388607
  %v175 = vor.u32 %v174, 8388608
  %v176 = vsub.s32 0, %v175
  %v177 = vadd.s32 %v172, 1
  %vm178 = vcmp.gt.s32.totalorder %v177, 0
  %v179 = vsel %vm178, %v177, 0
  %v180 = vshrl.u32 %v179, 5
  %v181 = vand.u32 %v179, 31
  %v182 = vsub.s32 32, %v181
  %v183 = vshrl.u32 683565275, %v182
  %v184 = vshll.u32 683565275, %v181
  %v185 = vshrl.u32 2475754826, %v182
  %v186 = vor.u32 %v184, %v185
  %v187 = vshll.u32 2475754826, %v181
  %v188 = vshrl.u32 2131351028, %v182
  %v189 = vor.u32 %v187, %v188
  %v190 = vshll.u32 2131351028, %v181
  %v191 = vshrl.u32 2102212464, %v182
  %v192 = vor.u32 %v190, %v191
  %v193 = vshll.u32 2102212464, %v181
  %v194 = vshrl.u32 920167782, %v182
  %v195 = vor.u32 %v193, %v194
  %v196 = vshll.u32 920167782, %v181
  %v197 = vshrl.u32 1326507024, %v182
  %v198 = vor.u32 %v196, %v197
  %vm199 = vcmp.lt.s32.totalorder %v180, 1
  %vm200 = vcmp.lt.s32.totalorder %v180, 2
  %vm201 = vcmp.lt.s32.totalorder %v180, 3
  %vm202 = vcmp.lt.s32.totalorder %v180, 4
  %v203 = vsel %vm199, %v183, %v186
  %v204 = vsel %vm202, %v192, 2102212464
  %v205 = vsel %vm201, %v189, %v204
  %v206 = vsel %vm200, %v203, %v205
  %v207 = vsel %vm199, %v186, %v189
  %v208 = vsel %vm202, %v195, 920167782
  %v209 = vsel %vm201, %v192, %v208
  %v210 = vsel %vm200, %v207, %v209
  %v211 = vsel %vm199, %v189, %v192
  %v212 = vsel %vm202, %v198, 1326507024
  %v213 = vsel %vm201, %v195, %v212
  %v214 = vsel %vm200, %v211, %v213
  %v215 = vshll.u32 %v175, 8
  %v216 = vmul.u32.u64.compose %v215, %v214
  %v217 = vextract.low.u32 %v216
  %v218 = vextract.high.u32 %v216
  %v219 = vmul.u32.u64.compose %v215, %v210
  %v220 = vextract.low.u32 %v219
  %v221 = vextract.high.u32 %v219
  %v222 = vmul.u32 %v215, %v206
  %v223 = vadd.s32 %v218, %v220
  %vm224 = vc.u32 %v218, %v220
  %v225 = vadd.s32 %v221, 1
  %v226 = vsel %vm224, %v225, %v221
  %v227 = vadd.s32 %v222, %v226
  %v228 = vadd.s32 %v227, 536870912
  %v229 = vshrl.u32 %v228, 30
  %v230 = vshll.u32 %v229, 30
  %v231 = vsub.s32 %v227, %v230
  %vm232 = vcmp.lt.s32.totalorder %v231, 0
  %v233 = vsub.s32 0, %v231
  %v234 = vsel %vm232, %v233, %v231
  %v235 = vclz %v234
  %v236 = vsub.s32 %v235, 2
  %vm237 = vcmp.gt.s32.totalorder 0, %v236
  %v238 = vsel %vm237, 0, %v236
  %v239 = vsub.s32 32, %v238
  %v240 = vshll.u32 %v231, %v238
  %v241 = vshrl.u32 %v223, %v239
  %v242 = vor.u32 %v240, %v241
  %v243 = vsub.s32 4294967266, %v238
  %v244 = vadd.s32 %v243, 127
  %v245 = vshll.u32 %v244, 23
  %v246 = vor.u32 4788187, %v245
  %v247 = vand.u32 2147483647, %v246
  %v249 = vcvt.s32.f32 %v242
  %v250 = vmul.f32 %v249, %v247
  %v251 = vxor.u32 %v250, 2147483648
  %v252 = vsel %vm169, %v251, %v250
  %v253 = vsub.s32 4, %v229
  %v254 = vsel %vm169, %v253, %v229
  %v255 = vsel %vm168, %v60, %v252
  %v256 = vsel %vm168, 0, %v254
  %v257 = vcosq.f32.pop %v255
  %v258 = vsinq.f32.pop %v255
  %vm259 = vweird.f32 %v60
  %v260 = vadd.s32 %v256, 3
  %v261 = vand.u32 %v260, 3
  %vm262 = vcmp.lt.s32.totalorder %v261, 2
  %vm263 = vcmp.eq.s32.totalorder %v261, 0
  %v264 = vxor.u32 %v258, 2147483648
  %v265 = vsel %vm263, %v257, %v264
  %vm266 = vcmp.eq.s32.totalorder %v261, 2
  %v267 = vxor.u32 %v257, 2147483648
  %v268 = vsel %vm266, %v267, %v258
  %v269 = vsel %vm262, %v265, %v268
  %v270 = vsel %vm259, nan, %v269
  %v271 = vand.u32 2147483647, %v61
  %vm272 = vcmp.le.f32.partialorder %v271, 0.7853982
  %vm273 = vcmp.lt.s32.totalorder %v61, 0
  %v274 = vand.u32 %v61, 2139095040
  %v275 = vshrl.u32 %v274, 23
  %v276 = vsub.s32 %v275, 127
  %v277 = vand.u32 2147483647, %v61
  %v278 = vand.u32 %v277, 8388607
  %v279 = vor.u32 %v278, 8388608
  %v280 = vsub.s32 0, %v279
  %v281 = vadd.s32 %v276, 1
  %vm282 = vcmp.gt.s32.totalorder %v281, 0
  %v283 = vsel %vm282, %v281, 0
  %v284 = vshrl.u32 %v283, 5
  %v285 = vand.u32 %v283, 31
  %v286 = vsub.s32 32, %v285
  %v287 = vshrl.u32 683565275, %v286
  %v288 = vshll.u32 683565275, %v285
  %v289 = vshrl.u32 2475754826, %v286
  %v290 = vor.u32 %v288, %v289
  %v291 = vshll.u32 2475754826, %v285
  %v292 = vshrl.u32 2131351028, %v286
  %v293 = vor.u32 %v291, %v292
  %v294 = vshll.u32 2131351028, %v285
  %v295 = vshrl.u32 2102212464, %v286
  %v296 = vor.u32 %v294, %v295
  %v297 = vshll.u32 2102212464, %v285
  %v298 = vshrl.u32 920167782, %v286
  %v299 = vor.u32 %v297, %v298
  %v300 = vshll.u32 920167782, %v285
  %v301 = vshrl.u32 1326507024, %v286
  %v302 = vor.u32 %v300, %v301
  %vm303 = vcmp.lt.s32.totalorder %v284, 1
  %vm304 = vcmp.lt.s32.totalorder %v284, 2
  %vm305 = vcmp.lt.s32.totalorder %v284, 3
  %vm306 = vcmp.lt.s32.totalorder %v284, 4
  %v307 = vsel %vm303, %v287, %v290
  %v308 = vsel %vm306, %v296, 2102212464
  %v309 = vsel %vm305, %v293, %v308
  %v310 = vsel %vm304, %v307, %v309
  %v311 = vsel %vm303, %v290, %v293
  %v312 = vsel %vm306, %v299, 920167782
  %v313 = vsel %vm305, %v296, %v312
  %v314 = vsel %vm304, %v311, %v313
  %v315 = vsel %vm303, %v293, %v296
  %v316 = vsel %vm306, %v302, 1326507024
  %v317 = vsel %vm305, %v299, %v316
  %v318 = vsel %vm304, %v315, %v317
  %v319 = vshll.u32 %v279, 8
  %v320 = vmul.u32.u64.compose %v319, %v318
  %v321 = vextract.low.u32 %v320
  %v322 = vextract.high.u32 %v320
  %v323 = vmul.u32.u64.compose %v319, %v314
  %v324 = vextract.low.u32 %v323
  %v325 = vextract.high.u32 %v323
  %v326 = vmul.u32 %v319, %v310
  %v327 = vadd.s32 %v322, %v324
  %vm328 = vc.u32 %v322, %v324
  %v329 = vadd.s32 %v325, 1
  %v330 = vsel %vm328, %v329, %v325
  %v331 = vadd.s32 %v326, %v330
  %v332 = vadd.s32 %v331, 536870912
  %v333 = vshrl.u32 %v332, 30
  %v334 = vshll.u32 %v333, 30
  %v335 = vsub.s32 %v331, %v334
  %vm336 = vcmp.lt.s32.totalorder %v335, 0
  %v337 = vsub.s32 0, %v335
  %v338 = vsel %vm336, %v337, %v335
  %v339 = vclz %v338
  %v340 = vsub.s32 %v339, 2
  %vm341 = vcmp.gt.s32.totalorder 0, %v340
  %v342 = vsel %vm341, 0, %v340
  %v343 = vsub.s32 32, %v342
  %v344 = vshll.u32 %v335, %v342
  %v345 = vshrl.u32 %v327, %v343
  %v346 = vor.u32 %v344, %v345
  %v347 = vsub.s32 4294967266, %v342
  %v348 = vadd.s32 %v347, 127
  %v349 = vshll.u32 %v348, 23
  %v350 = vor.u32 4788187, %v349
  %v351 = vand.u32 2147483647, %v350
  %v353 = vcvt.s32.f32 %v346
  %v354 = vmul.f32 %v353, %v351
  %v355 = vxor.u32 %v354, 2147483648
  %v356 = vsel %vm273, %v355, %v354
  %v357 = vsub.s32 4, %v333
  %v358 = vsel %vm273, %v357, %v333
  %v359 = vsel %vm272, %v61, %v356
  %v360 = vsel %vm272, 0, %v358
  %v361 = vcosq.f32.pop %v359
  %v362 = vsinq.f32.pop %v359
  %vm363 = vweird.f32 %v61
  %v364 = vadd.s32 %v360, 3
  %v365 = vand.u32 %v364, 3
  %vm366 = vcmp.lt.s32.totalorder %v365, 2
  %vm367 = vcmp.eq.s32.totalorder %v365, 0
  %v368 = vxor.u32 %v362, 2147483648
  %v369 = vsel %vm367, %v361, %v368
  %vm370 = vcmp.eq.s32.totalorder %v365, 2
  %v371 = vxor.u32 %v361, 2147483648
  %v372 = vsel %vm370, %v371, %v362
  %v373 = vsel %vm366, %v369, %v372
  %v374 = vsel %vm363, nan, %v373
  %375 = vst [vmem:[%s2 + $0x3] sm:$0xff] %v166
  %376 = vst [vmem:[%s2 + $0xb] sm:$0xff] %v270
  %377 = vst [vmem:[%s2 + $0x13] sm:$0xff] %v374
  %v378 = vand.u32 2147483647, %v59
  %vm379 = vcmp.le.f32.partialorder %v378, 0.7853982
  %vm380 = vcmp.lt.s32.totalorder %v59, 0
  %v381 = vand.u32 %v59, 2139095040
  %v382 = vshrl.u32 %v381, 23
  %v383 = vsub.s32 %v382, 127
  %v384 = vand.u32 2147483647, %v59
  %v385 = vand.u32 %v384, 8388607
  %v386 = vor.u32 %v385, 8388608
  %v387 = vsub.s32 0, %v386
  %v388 = vadd.s32 %v383, 1
  %vm389 = vcmp.gt.s32.totalorder %v388, 0
  %v390 = vsel %vm389, %v388, 0
  %v391 = vshrl.u32 %v390, 5
  %v392 = vand.u32 %v390, 31
  %v393 = vsub.s32 32, %v392
  %v394 = vshrl.u32 683565275, %v393
  %v395 = vshll.u32 683565275, %v392
  %v396 = vshrl.u32 2475754826, %v393
  %v397 = vor.u32 %v395, %v396
  %v398 = vshll.u32 2475754826, %v392
  %v399 = vshrl.u32 2131351028, %v393
  %v400 = vor.u32 %v398, %v399
  %v401 = vshll.u32 2131351028, %v392
  %v402 = vshrl.u32 2102212464, %v393
  %v403 = vor.u32 %v401, %v402
  %v404 = vshll.u32 2102212464, %v392
  %v405 = vshrl.u32 920167782, %v393
  %v406 = vor.u32 %v404, %v405
  %v407 = vshll.u32 920167782, %v392
  %v408 = vshrl.u32 1326507024, %v393
  %v409 = vor.u32 %v407, %v408
  %vm410 = vcmp.lt.s32.totalorder %v391, 1
  %vm411 = vcmp.lt.s32.totalorder %v391, 2
  %vm412 = vcmp.lt.s32.totalorder %v391, 3
  %vm413 = vcmp.lt.s32.totalorder %v391, 4
  %v414 = vsel %vm410, %v394, %v397
  %v415 = vsel %vm413, %v403, 2102212464
  %v416 = vsel %vm412, %v400, %v415
  %v417 = vsel %vm411, %v414, %v416
  %v418 = vsel %vm410, %v397, %v400
  %v419 = vsel %vm413, %v406, 920167782
  %v420 = vsel %vm412, %v403, %v419
  %v421 = vsel %vm411, %v418, %v420
  %v422 = vsel %vm410, %v400, %v403
  %v423 = vsel %vm413, %v409, 1326507024
  %v424 = vsel %vm412, %v406, %v423
  %v425 = vsel %vm411, %v422, %v424
  %v426 = vshll.u32 %v386, 8
  %v427 = vmul.u32.u64.compose %v426, %v425
  %v428 = vextract.low.u32 %v427
  %v429 = vextract.high.u32 %v427
  %v430 = vmul.u32.u64.compose %v426, %v421
  %v431 = vextract.low.u32 %v430
  %v432 = vextract.high.u32 %v430
  %v433 = vmul.u32 %v426, %v417
  %v434 = vadd.s32 %v429, %v431
  %vm435 = vc.u32 %v429, %v431
  %v436 = vadd.s32 %v432, 1
  %v437 = vsel %vm435, %v436, %v432
  %v438 = vadd.s32 %v433, %v437
  %v439 = vadd.s32 %v438, 536870912
  %v440 = vshrl.u32 %v439, 30
  %v441 = vshll.u32 %v440, 30
  %v442 = vsub.s32 %v438, %v441
  %vm443 = vcmp.lt.s32.totalorder %v442, 0
  %v444 = vsub.s32 0, %v442
  %v445 = vsel %vm443, %v444, %v442
  %v446 = vclz %v445
  %v447 = vsub.s32 %v446, 2
  %vm448 = vcmp.gt.s32.totalorder 0, %v447
  %v449 = vsel %vm448, 0, %v447
  %v450 = vsub.s32 32, %v449
  %v451 = vshll.u32 %v442, %v449
  %v452 = vshrl.u32 %v434, %v450
  %v453 = vor.u32 %v451, %v452
  %v454 = vsub.s32 4294967266, %v449
  %v455 = vadd.s32 %v454, 127
  %v456 = vshll.u32 %v455, 23
  %v457 = vor.u32 4788187, %v456
  %v458 = vand.u32 2147483647, %v457
  %v460 = vcvt.s32.f32 %v453
  %v461 = vmul.f32 %v460, %v458
  %v462 = vxor.u32 %v461, 2147483648
  %v463 = vsel %vm380, %v462, %v461
  %v464 = vsub.s32 4, %v440
  %v465 = vsel %vm380, %v464, %v440
  %v466 = vsel %vm379, %v59, %v463
  %v467 = vsel %vm379, 0, %v465
  %v468 = vcosq.f32.pop %v466
  %v469 = vsinq.f32.pop %v466
  %vm470 = vweird.f32 %v59
  %v471 = vand.u32 %v467, 3
  %vm472 = vcmp.lt.s32.totalorder %v471, 2
  %vm473 = vcmp.eq.s32.totalorder %v471, 0
  %v474 = vxor.u32 %v469, 2147483648
  %v475 = vsel %vm473, %v468, %v474
  %vm476 = vcmp.eq.s32.totalorder %v471, 2
  %v477 = vxor.u32 %v468, 2147483648
  %v478 = vsel %vm476, %v477, %v469
  %v479 = vsel %vm472, %v475, %v478
  %v480 = vsel %vm470, nan, %v479
  %v481 = vand.u32 2147483647, %v60
  %vm482 = vcmp.le.f32.partialorder %v481, 0.7853982
  %vm483 = vcmp.lt.s32.totalorder %v60, 0
  %v484 = vand.u32 %v60, 2139095040
  %v485 = vshrl.u32 %v484, 23
  %v486 = vsub.s32 %v485, 127
  %v487 = vand.u32 2147483647, %v60
  %v488 = vand.u32 %v487, 8388607
  %v489 = vor.u32 %v488, 8388608
  %v490 = vsub.s32 0, %v489
  %v491 = vadd.s32 %v486, 1
  %vm492 = vcmp.gt.s32.totalorder %v491, 0
  %v493 = vsel %vm492, %v491, 0
  %v494 = vshrl.u32 %v493, 5
  %v495 = vand.u32 %v493, 31
  %v496 = vsub.s32 32, %v495
  %v497 = vshrl.u32 683565275, %v496
  %v498 = vshll.u32 683565275, %v495
  %v499 = vshrl.u32 2475754826, %v496
  %v500 = vor.u32 %v498, %v499
  %v501 = vshll.u32 2475754826, %v495
  %v502 = vshrl.u32 2131351028, %v496
  %v503 = vor.u32 %v501, %v502
  %v504 = vshll.u32 2131351028, %v495
  %v505 = vshrl.u32 2102212464, %v496
  %v506 = vor.u32 %v504, %v505
  %v507 = vshll.u32 2102212464, %v495
  %v508 = vshrl.u32 920167782, %v496
  %v509 = vor.u32 %v507, %v508
  %v510 = vshll.u32 920167782, %v495
  %v511 = vshrl.u32 1326507024, %v496
  %v512 = vor.u32 %v510, %v511
  %vm513 = vcmp.lt.s32.totalorder %v494, 1
  %vm514 = vcmp.lt.s32.totalorder %v494, 2
  %vm515 = vcmp.lt.s32.totalorder %v494, 3
  %vm516 = vcmp.lt.s32.totalorder %v494, 4
  %v517 = vsel %vm513, %v497, %v500
  %v518 = vsel %vm516, %v506, 2102212464
  %v519 = vsel %vm515, %v503, %v518
  %v520 = vsel %vm514, %v517, %v519
  %v521 = vsel %vm513, %v500, %v503
  %v522 = vsel %vm516, %v509, 920167782
  %v523 = vsel %vm515, %v506, %v522
  %v524 = vsel %vm514, %v521, %v523
  %v525 = vsel %vm513, %v503, %v506
  %v526 = vsel %vm516, %v512, 1326507024
  %v527 = vsel %vm515, %v509, %v526
  %v528 = vsel %vm514, %v525, %v527
  %v529 = vshll.u32 %v489, 8
  %v530 = vmul.u32.u64.compose %v529, %v528
  %v531 = vextract.low.u32 %v530
  %v532 = vextract.high.u32 %v530
  %v533 = vmul.u32.u64.compose %v529, %v524
  %v534 = vextract.low.u32 %v533
  %v535 = vextract.high.u32 %v533
  %v536 = vmul.u32 %v529, %v520
  %v537 = vadd.s32 %v532, %v534
  %vm538 = vc.u32 %v532, %v534
  %v539 = vadd.s32 %v535, 1
  %v540 = vsel %vm538, %v539, %v535
  %v541 = vadd.s32 %v536, %v540
  %v542 = vadd.s32 %v541, 536870912
  %v543 = vshrl.u32 %v542, 30
  %v544 = vshll.u32 %v543, 30
  %v545 = vsub.s32 %v541, %v544
  %vm546 = vcmp.lt.s32.totalorder %v545, 0
  %v547 = vsub.s32 0, %v545
  %v548 = vsel %vm546, %v547, %v545
  %v549 = vclz %v548
  %v550 = vsub.s32 %v549, 2
  %vm551 = vcmp.gt.s32.totalorder 0, %v550
  %v552 = vsel %vm551, 0, %v550
  %v553 = vsub.s32 32, %v552
  %v554 = vshll.u32 %v545, %v552
  %v555 = vshrl.u32 %v537, %v553
  %v556 = vor.u32 %v554, %v555
  %v557 = vsub.s32 4294967266, %v552
  %v558 = vadd.s32 %v557, 127
  %v559 = vshll.u32 %v558, 23
  %v560 = vor.u32 4788187, %v559
  %v561 = vand.u32 2147483647, %v560
  %v563 = vcvt.s32.f32 %v556
  %v564 = vmul.f32 %v563, %v561
  %v565 = vxor.u32 %v564, 2147483648
  %v566 = vsel %vm483, %v565, %v564
  %v567 = vsub.s32 4, %v543
  %v568 = vsel %vm483, %v567, %v543
  %v569 = vsel %vm482, %v60, %v566
  %v570 = vsel %vm482, 0, %v568
  %v571 = vcosq.f32.pop %v569
  %v572 = vsinq.f32.pop %v569
  %vm573 = vweird.f32 %v60
  %v574 = vand.u32 %v570, 3
  %vm575 = vcmp.lt.s32.totalorder %v574, 2
  %vm576 = vcmp.eq.s32.totalorder %v574, 0
  %v577 = vxor.u32 %v572, 2147483648
  %v578 = vsel %vm576, %v571, %v577
  %vm579 = vcmp.eq.s32.totalorder %v574, 2
  %v580 = vxor.u32 %v571, 2147483648
  %v581 = vsel %vm579, %v580, %v572
  %v582 = vsel %vm575, %v578, %v581
  %v583 = vsel %vm573, nan, %v582
  %v584 = vand.u32 2147483647, %v61
  %vm585 = vcmp.le.f32.partialorder %v584, 0.7853982
  %vm586 = vcmp.lt.s32.totalorder %v61, 0
  %v587 = vand.u32 %v61, 2139095040
  %v588 = vshrl.u32 %v587, 23
  %v589 = vsub.s32 %v588, 127
  %v590 = vand.u32 2147483647, %v61
  %v591 = vand.u32 %v590, 8388607
  %v592 = vor.u32 %v591, 8388608
  %v593 = vsub.s32 0, %v592
  %v594 = vadd.s32 %v589, 1
  %vm595 = vcmp.gt.s32.totalorder %v594, 0
  %v596 = vsel %vm595, %v594, 0
  %v597 = vshrl.u32 %v596, 5
  %v598 = vand.u32 %v596, 31
  %v599 = vsub.s32 32, %v598
  %v600 = vshrl.u32 683565275, %v599
  %v601 = vshll.u32 683565275, %v598
  %v602 = vshrl.u32 2475754826, %v599
  %v603 = vor.u32 %v601, %v602
  %v604 = vshll.u32 2475754826, %v598
  %v605 = vshrl.u32 2131351028, %v599
  %v606 = vor.u32 %v604, %v605
  %v607 = vshll.u32 2131351028, %v598
  %v608 = vshrl.u32 2102212464, %v599
  %v609 = vor.u32 %v607, %v608
  %v610 = vshll.u32 2102212464, %v598
  %v611 = vshrl.u32 920167782, %v599
  %v612 = vor.u32 %v610, %v611
  %v613 = vshll.u32 920167782, %v598
  %v614 = vshrl.u32 1326507024, %v599
  %v615 = vor.u32 %v613, %v614
  %vm616 = vcmp.lt.s32.totalorder %v597, 1
  %vm617 = vcmp.lt.s32.totalorder %v597, 2
  %vm618 = vcmp.lt.s32.totalorder %v597, 3
  %vm619 = vcmp.lt.s32.totalorder %v597, 4
  %v620 = vsel %vm616, %v600, %v603
  %v621 = vsel %vm619, %v609, 2102212464
  %v622 = vsel %vm618, %v606, %v621
  %v623 = vsel %vm617, %v620, %v622
  %v624 = vsel %vm616, %v603, %v606
  %v625 = vsel %vm619, %v612, 920167782
  %v626 = vsel %vm618, %v609, %v625
  %v627 = vsel %vm617, %v624, %v626
  %v628 = vsel %vm616, %v606, %v609
  %v629 = vsel %vm619, %v615, 1326507024
  %v630 = vsel %vm618, %v612, %v629
  %v631 = vsel %vm617, %v628, %v630
  %v632 = vshll.u32 %v592, 8
  %v633 = vmul.u32.u64.compose %v632, %v631
  %v634 = vextract.low.u32 %v633
  %v635 = vextract.high.u32 %v633
  %v636 = vmul.u32.u64.compose %v632, %v627
  %v637 = vextract.low.u32 %v636
  %v638 = vextract.high.u32 %v636
  %v639 = vmul.u32 %v632, %v623
  %v640 = vadd.s32 %v635, %v637
  %vm641 = vc.u32 %v635, %v637
  %v642 = vadd.s32 %v638, 1
  %v643 = vsel %vm641, %v642, %v638
  %v644 = vadd.s32 %v639, %v643
  %v645 = vadd.s32 %v644, 536870912
  %v646 = vshrl.u32 %v645, 30
  %v647 = vshll.u32 %v646, 30
  %v648 = vsub.s32 %v644, %v647
  %vm649 = vcmp.lt.s32.totalorder %v648, 0
  %v650 = vsub.s32 0, %v648
  %v651 = vsel %vm649, %v650, %v648
  %v652 = vclz %v651
  %v653 = vsub.s32 %v652, 2
  %vm654 = vcmp.gt.s32.totalorder 0, %v653
  %v655 = vsel %vm654, 0, %v653
  %v656 = vsub.s32 32, %v655
  %v657 = vshll.u32 %v648, %v655
  %v658 = vshrl.u32 %v640, %v656
  %v659 = vor.u32 %v657, %v658
  %v660 = vsub.s32 4294967266, %v655
  %v661 = vadd.s32 %v660, 127
  %v662 = vshll.u32 %v661, 23
  %v663 = vor.u32 4788187, %v662
  %v664 = vand.u32 2147483647, %v663
  %v666 = vcvt.s32.f32 %v659
  %v667 = vmul.f32 %v666, %v664
  %v668 = vxor.u32 %v667, 2147483648
  %v669 = vsel %vm586, %v668, %v667
  %v670 = vsub.s32 4, %v646
  %v671 = vsel %vm586, %v670, %v646
  %v672 = vsel %vm585, %v61, %v669
  %v673 = vsel %vm585, 0, %v671
  %v674 = vcosq.f32.pop %v672
  %v675 = vsinq.f32.pop %v672
  %vm676 = vweird.f32 %v61
  %v677 = vand.u32 %v673, 3
  %vm678 = vcmp.lt.s32.totalorder %v677, 2
  %vm679 = vcmp.eq.s32.totalorder %v677, 0
  %v680 = vxor.u32 %v675, 2147483648
  %v681 = vsel %vm679, %v674, %v680
  %vm682 = vcmp.eq.s32.totalorder %v677, 2
  %v683 = vxor.u32 %v674, 2147483648
  %v684 = vsel %vm682, %v683, %v675
  %v685 = vsel %vm678, %v681, %v684
  %v686 = vsel %vm676, nan, %v685
  %687 = vst [vmem:[%s2 + $0x1b] sm:$0xff] %v480
  %688 = vst [vmem:[%s2 + $0x23] sm:$0xff] %v583
  %689 = vst [vmem:[%s2 + $0x2b] sm:$0xff] %v686
  // Predicated region
  $region10: #{gaussian_positional_encoding.1} parent=0 // pred_check
    _
  $region11: #{gaussian_positional_encoding.1} parent=0 // pred_check_branch
    %691 = sbr.rel (0) target = $region13
  $region12: #{gaussian_positional_encoding.1} parent=0 // pred_region
    _
  $region13: #{gaussian_positional_encoding.1} parent=0 // pred_fallthru
    _
  // Predicated region
  $region14: #{gaussian_positional_encoding.1} parent=0 // pred_check
    _
  $region15: #{gaussian_positional_encoding.1} parent=0 // pred_check_branch
    %693 = sbr.rel (0) target = $region17
  $region16: #{gaussian_positional_encoding.1} parent=0 // pred_region
    _
  $region17: #{gaussian_positional_encoding.1} parent=0 // pred_fallthru
    _

</llo_original>
